<compile_context>
chip_gen: v5e
topology: v5e:2x2
jax: 0.10.0
libtpu: 0.0.40
codegen_flags: <defaults>
</compile_context>

<pallas_src>
import functools

import jax
import jax.numpy as jnp
from jax.experimental import pallas as pl
from jax.experimental.pallas import tpu as pltpu


def _round_up(n, m):
    return ((n + m - 1) // m) * m


def _ensemble_kernel(x_ref, xr_ref, w_ref, v_ref, b_ref, avg_ref, o_ref):
    # x_ref:   (Bp, Din)          f32
    # xr_ref:  (Bp, Draw)         f32
    # w_ref:   (Din, Npack)       f32   column m*Dout+d holds W[m, :, d]
    # v_ref:   (Draw, Npack)      f32   column m*Dout+d holds V[m, :, d]
    # b_ref:   (1, Npack)         f32
    # avg_ref: (Npack, DoutPad)   f32   averaging matrix (1/M at [m*Dout+d, d])
    # o_ref:   (Bp, DoutPad)      f32
    y = jnp.dot(x_ref[...], w_ref[...], preferred_element_type=jnp.float32)
    y = y + jnp.dot(xr_ref[...], v_ref[...], preferred_element_type=jnp.float32)
    y = jnp.maximum(y + b_ref[...], 0.0)           # per-model bias + relu, all models at once
    # Cross-model mean via one small MXU pass (zero rows in avg_ref kill the
    # padded columns; zero-weight/zero-bias padded columns are relu(0)=0 anyway).
    o_ref[...] = jnp.dot(y, avg_ref[...], preferred_element_type=jnp.float32)


def pack_params(params):
    """One-time packing of ensemble params into MXU/lane-friendly layout."""
    W, V, b = params                      # (M, Din, Dout), (M, Draw, Dout), (M, 1, Dout)
    M, Din, Dout = W.shape
    Draw = V.shape[1]

    n_pack = _round_up(M * Dout, 128)             # total packed lane width
    d_out_pad = _round_up(max(Dout, 128), 128)    # lane-dense output width

    # Models packed contiguously along lanes (model-major, feature-minor).
    W_pack = jnp.transpose(W, (1, 0, 2)).reshape(Din, M * Dout)
    V_pack = jnp.transpose(V, (1, 0, 2)).reshape(Draw, M * Dout)
    b_pack = b.reshape(1, M * Dout)

    pad_cols = n_pack - M * Dout
    W_pack = jnp.pad(W_pack, ((0, 0), (0, pad_cols)))
    V_pack = jnp.pad(V_pack, ((0, 0), (0, pad_cols)))
    b_pack = jnp.pad(b_pack, ((0, 0), (0, pad_cols)))

    # Averaging matrix: out[:, d] = (1/M) * sum_m y[:, m*Dout + d].
    rows = jnp.arange(M * Dout)
    cols = rows % Dout
    A = jnp.zeros((n_pack, d_out_pad), jnp.float32).at[rows, cols].set(1.0 / M)

    meta = dict(M=M, Din=Din, Draw=Draw, Dout=Dout, n_pack=n_pack, d_out_pad=d_out_pad)
    return (W_pack, V_pack, b_pack, A), meta


@functools.partial(jax.jit, static_argnames=("d_out_pad",))
def _ensemble_call(x_p, xr_p, W_pack, V_pack, b_pack, A, *, d_out_pad):
    b_rows = x_p.shape[0]
    return pl.pallas_call(
        _ensemble_kernel,
        out_shape=jax.ShapeDtypeStruct((b_rows, d_out_pad), jnp.float32),
        in_specs=[
            pl.BlockSpec(memory_space=pltpu.MemorySpace.VMEM),  # x
            pl.BlockSpec(memory_space=pltpu.MemorySpace.VMEM),  # x_raw
            pl.BlockSpec(memory_space=pltpu.MemorySpace.VMEM),  # packed W
            pl.BlockSpec(memory_space=pltpu.MemorySpace.VMEM),  # packed V
            pl.BlockSpec(memory_space=pltpu.MemorySpace.VMEM),  # packed bias
            pl.BlockSpec(memory_space=pltpu.MemorySpace.VMEM),  # averaging matrix
        ],
        out_specs=pl.BlockSpec(memory_space=pltpu.MemorySpace.VMEM),
    )(x_p, xr_p, W_pack, V_pack, b_pack, A)


def ensemble_forward(x, x_raw, sess, packed, meta):
    """Pallas equivalent of EnsembleModel.forward. Returns (mean_output, None)."""
    del sess  # bookkeeping only; unused by the synthetic sub-models
    W_pack, V_pack, b_pack, A = packed
    B = x.shape[0]
    Dout = meta["Dout"]
    d_out_pad = meta["d_out_pad"]

    # Batch-row pad for clean sublane tiling (no-op when B is already a
    # multiple of 8, as in this test).
    b_rows = _round_up(max(B, 8), 8)
    if b_rows != B:
        x = jnp.pad(x, ((0, b_rows - B), (0, 0)))
        x_raw = jnp.pad(x_raw, ((0, b_rows - B), (0, 0)))

    out = _ensemble_call(x, x_raw, W_pack, V_pack, b_pack, A, d_out_pad=d_out_pad)
    return out[:B, :Dout], None


def _reference(x, x_raw, params):
    W, V, b = params
    ys = []
    for i in range(W.shape[0]):
        y = jnp.maximum(x @ W[i] + x_raw @ V[i] + b[i], 0.0)
        ys.append(y)
    return jnp.mean(jnp.stack(ys, 0), axis=0)


if __name__ == "__main__":
    # Small, deterministic shapes.
    B, Din, Draw, Dout, M = 8, 32, 16, 32, 3

    key = jax.random.PRNGKey(0)
    kx, kxr, kw, kv, kb = jax.random.split(key, 5)

    x = jax.random.normal(kx, (B, Din), dtype=jnp.float32)
    x_raw = jax.random.normal(kxr, (B, Draw), dtype=jnp.float32)
    sess = None  # unused bookkeeping argument

    # Deterministic parameter init (one set per ensemble member).
    W = jax.random.normal(kw, (M, Din, Dout), dtype=jnp.float32) * 0.1
    V = jax.random.normal(kv, (M, Draw, Dout), dtype=jnp.float32) * 0.1
    b = jax.random.normal(kb, (M, 1, Dout), dtype=jnp.float32) * 0.01
    params = (W, V, b)

    # One-time packing (init-time, not on the per-call path).
    packed, meta = pack_params(params)
    packed = jax.block_until_ready(packed)

    out, aux = ensemble_forward(x, x_raw, sess, packed, meta)
    out = jax.block_until_ready(out)

    ref = _reference(x, x_raw, params)
    assert out.shape == (B, Dout)
    assert aux is None
    assert jnp.allclose(out, ref, atol=1e-5, rtol=1e-5)

    print("KERNEL_OK")
</pallas_src>

<mosaic_0001>
module attributes {stable_mosaic.version = 11 : i64} {
  func.func @_ensemble_kernel(%arg0: memref<8x32xf32, #tpu.memory_space<vmem>>, %arg1: memref<8x16xf32, #tpu.memory_space<vmem>>, %arg2: memref<32x128xf32, #tpu.memory_space<vmem>>, %arg3: memref<16x128xf32, #tpu.memory_space<vmem>>, %arg4: memref<1x128xf32, #tpu.memory_space<vmem>>, %arg5: memref<128x128xf32, #tpu.memory_space<vmem>>, %arg6: memref<8x128xf32, #tpu.memory_space<vmem>>) attributes {dimension_semantics = [], scalar_prefetch = 0 : i64, scratch_operands = 0 : i64, tpu.core_type = #tpu.core_type<tc>} {
    %c0 = arith.constant 0 : index
    %c0_0 = arith.constant 0 : index
    %0 = vector.load %arg0[%c0, %c0_0] : memref<8x32xf32, #tpu.memory_space<vmem>>, vector<8x32xf32>
    %c0_1 = arith.constant 0 : index
    %c0_2 = arith.constant 0 : index
    %1 = vector.load %arg2[%c0_1, %c0_2] : memref<32x128xf32, #tpu.memory_space<vmem>>, vector<32x128xf32>
    %cst = arith.constant dense<0.000000e+00> : vector<8x128xf32>
    %2 = tpu.matmul %0, %1, %cst {dimension_numbers = #tpu.dot_dimension_numbers<[1], [0], [0], [1], [0, 0, 1, 1], [], []>} : vector<8x32xf32>, vector<32x128xf32>, vector<8x128xf32> -> vector<8x128xf32>
    %c0_3 = arith.constant 0 : index
    %c0_4 = arith.constant 0 : index
    %3 = vector.load %arg1[%c0_3, %c0_4] : memref<8x16xf32, #tpu.memory_space<vmem>>, vector<8x16xf32>
    %c0_5 = arith.constant 0 : index
    %c0_6 = arith.constant 0 : index
    %4 = vector.load %arg3[%c0_5, %c0_6] : memref<16x128xf32, #tpu.memory_space<vmem>>, vector<16x128xf32>
    %cst_7 = arith.constant dense<0.000000e+00> : vector<8x128xf32>
    %5 = tpu.matmul %3, %4, %cst_7 {dimension_numbers = #tpu.dot_dimension_numbers<[1], [0], [0], [1], [0, 0, 1, 1], [], []>} : vector<8x16xf32>, vector<16x128xf32>, vector<8x128xf32> -> vector<8x128xf32>
    %6 = arith.addf %2, %5 : vector<8x128xf32>
    %c0_8 = arith.constant 0 : index
    %c0_9 = arith.constant 0 : index
    %7 = vector.load %arg4[%c0_8, %c0_9] : memref<1x128xf32, #tpu.memory_space<vmem>>, vector<1x128xf32>
    %8 = vector.broadcast %7 : vector<1x128xf32> to vector<8x128xf32>
    %9 = arith.addf %6, %8 : vector<8x128xf32>
    %cst_10 = arith.constant 0.000000e+00 : f32
    %10 = vector.broadcast %cst_10 : f32 to vector<8x128xf32>
    %11 = arith.maximumf %9, %10 : vector<8x128xf32>
    %c0_11 = arith.constant 0 : index
    %c0_12 = arith.constant 0 : index
    %12 = vector.load %arg5[%c0_11, %c0_12] : memref<128x128xf32, #tpu.memory_space<vmem>>, vector<128x128xf32>
    %cst_13 = arith.constant dense<0.000000e+00> : vector<8x128xf32>
    %13 = tpu.matmul %11, %12, %cst_13 {dimension_numbers = #tpu.dot_dimension_numbers<[1], [0], [0], [1], [0, 0, 1, 1], [], []>} : vector<8x128xf32>, vector<128x128xf32>, vector<8x128xf32> -> vector<8x128xf32>
    %c0_14 = arith.constant 0 : index
    %c0_15 = arith.constant 0 : index
    %14 = vector.load %arg6[%c0_14, %c0_15] : memref<8x128xf32, #tpu.memory_space<vmem>>, vector<8x128xf32>
    tpu.vector_store %arg6[%c0_14, %c0_15], %13 {strides = array<i32>} : memref<8x128xf32, #tpu.memory_space<vmem>>, vector<8x128xf32>,
    return
  }
}

</mosaic_0001>

<llo_original>
// kernel: _ensemble_call.1
$region0: #{_ensemble_call.1}
  #allocation0 [shape = 'u32[]', space=smem, size = 0x4, offset = 0x4, fixed_abs, tag = 'smem constant byte address 0x4 - core index']
  #allocation1 [shape = 'u32[72,128]{1,0:T(1,128)}', space=vmem, size = 0x9000, scoped, tag = 'internal scratch']
  %s0 = inlined_call_operand.hbm [shape: f32[8,32], index: 0, kind: input, shape index: {}]
  %s1 = inlined_call_operand.hbm [shape: f32[8,16], index: 1, kind: input, shape index: {}]
  %s2 = inlined_call_operand.hbm [shape: f32[32,128], index: 2, kind: input, shape index: {}]
  %s3 = inlined_call_operand.hbm [shape: f32[16,128], index: 3, kind: input, shape index: {}]
  %s4 = inlined_call_operand.vmem [shape: f32[1,128], index: 4, kind: input, shape index: {}]
  %s5 = inlined_call_operand.hbm [shape: f32[128,128], index: 5, kind: input, shape index: {}]
  %s6 = inlined_call_operand.hbm [shape: f32[8,128], index: 6, kind: output, shape index: {}]
  %s7 = sld [smem:[#allocation0]]
  $region54: #{_ensemble_call.1} parent=0
    _
  %s9 = ssub.s32 1, %s7
  %s10 = scalar_select 0, %s9, %s7
  $region1: #{_ensemble_call.1} parent=0
    #allocation2 [shape = 'u8[4096]{0}', space=vmem, size = 0x1000, scoped, tag = 'input window, operand 0, single buffered']
    #allocation3 [shape = 's32[1]{0}', space=sflag, size = 0x4, scoped, tag = 'scoped memory for _ensemble_call.1']
    #allocation4 [shape = 's32[1]{0}', space=sflag, size = 0x4, scoped, tag = 'scoped memory for _ensemble_call.1']
    #allocation5 [shape = 'u8[4096]{0}', space=vmem, size = 0x1000, scoped, tag = 'input window, operand 1, single buffered']
    #allocation6 [shape = 's32[1]{0}', space=sflag, size = 0x4, scoped, tag = 'scoped memory for _ensemble_call.1']
    #allocation7 [shape = 'u8[16384]{0}', space=vmem, size = 0x4000, scoped, tag = 'input window, operand 2, single buffered']
    #allocation8 [shape = 'u8[8192]{0}', space=vmem, size = 0x2000, scoped, tag = 'input window, operand 3, single buffered']
    #allocation9 [shape = 's32[1]{0}', space=sflag, size = 0x4, scoped, tag = 'scoped memory for _ensemble_call.1']
    #allocation10 [shape = 'u8[65536]{0}', space=vmem, size = 0x10000, scoped, tag = 'input window, operand 5, single buffered']
    #allocation11 [shape = 'u8[4096]{0}', space=vmem, size = 0x1000, scoped, tag = 'output window, operand 0, single buffered']
    %11 = vsyncpa [#allocation3], 0
    %12 = vsyncpa [#allocation6], 0
    %13 = vsyncpa [#allocation9], 0
    %14 = vsyncpa [#allocation4], 0
    // Predicated region
    $region2: #{_ensemble_call.1} parent=1 // pred_check
      _
    $region3: #{_ensemble_call.1} parent=1 // pred_check_branch
      %16 = sbr.rel (0) target = $region5
    $region4: #{_ensemble_call.1} parent=1 // pred_region
      %18 = vsyncadd [#allocation3], 0
      %s20 = sshll.u32 %s0, 4
      %s21 = int_to_ptr.hbm [resolvable:$true] %s20
      %s22 = sshll.u32 [#allocation2], 4
      %s23 = int_to_ptr.vmem [resolvable:$true] %s22
      %25 = dma.hbm_to_vmem [thread:$0]  %s21, 128, %s23, [#allocation3]
    $region5: #{_ensemble_call.1} parent=1 // pred_fallthru
      _
    // Predicated region
    $region6: #{_ensemble_call.1} parent=1 // pred_check
      _
    $region7: #{_ensemble_call.1} parent=1 // pred_check_branch
      %27 = sbr.rel (0) target = $region9
    $region8: #{_ensemble_call.1} parent=1 // pred_region
      %29 = vsyncadd [#allocation6], 0
      %s31 = sshll.u32 %s1, 4
      %s32 = int_to_ptr.hbm [resolvable:$true] %s31
      %s33 = sshll.u32 [#allocation5], 4
      %s34 = int_to_ptr.vmem [resolvable:$true] %s33
      %36 = dma.hbm_to_vmem [thread:$0]  %s32, 128, %s34, [#allocation6]
    $region9: #{_ensemble_call.1} parent=1 // pred_fallthru
      _
    // Predicated region
    $region10: #{_ensemble_call.1} parent=1 // pred_check
      _
    $region11: #{_ensemble_call.1} parent=1 // pred_check_branch
      %38 = sbr.rel (0) target = $region13
    $region12: #{_ensemble_call.1} parent=1 // pred_region
      %40 = vsyncadd [#allocation6], 0
      %s41 = sshll.u32 %s2, 4
      %s42 = int_to_ptr.hbm [resolvable:$true] %s41
      %s43 = sshll.u32 [#allocation7], 4
      %s44 = int_to_ptr.vmem [resolvable:$true] %s43
      %49 = dma.hbm_to_vmem [thread:$0]  %s42, 512, %s44, [#allocation6], 128, 128, 8
    $region13: #{_ensemble_call.1} parent=1 // pred_fallthru
      _
    // Predicated region
    $region14: #{_ensemble_call.1} parent=1 // pred_check
      _
    $region15: #{_ensemble_call.1} parent=1 // pred_check_branch
      %51 = sbr.rel (0) target = $region17
    $region16: #{_ensemble_call.1} parent=1 // pred_region
      %53 = vsyncadd [#allocation9], 0
      %s54 = sshll.u32 %s3, 4
      %s55 = int_to_ptr.hbm [resolvable:$true] %s54
      %s56 = sshll.u32 [#allocation8], 4
      %s57 = int_to_ptr.vmem [resolvable:$true] %s56
      %62 = dma.hbm_to_vmem [thread:$0]  %s55, 256, %s57, [#allocation9], 128, 128, 8
    $region17: #{_ensemble_call.1} parent=1 // pred_fallthru
      _
    // Predicated region
    $region18: #{_ensemble_call.1} parent=1 // pred_check
      _
    $region19: #{_ensemble_call.1} parent=1 // pred_check_branch
      %64 = sbr.rel (0) target = $region21
    $region20: #{_ensemble_call.1} parent=1 // pred_region
      _
    $region21: #{_ensemble_call.1} parent=1 // pred_fallthru
      _
    // Predicated region
    $region22: #{_ensemble_call.1} parent=1 // pred_check
      _
    $region23: #{_ensemble_call.1} parent=1 // pred_check_branch
      %66 = sbr.rel (0) target = $region25
    $region24: #{_ensemble_call.1} parent=1 // pred_region
      %68 = vsyncadd [#allocation9], 0
      %s69 = sshll.u32 %s5, 4
      %s70 = int_to_ptr.hbm [resolvable:$true] %s69
      %s71 = sshll.u32 [#allocation10], 4
      %s72 = int_to_ptr.vmem [resolvable:$true] %s71
      %77 = dma.hbm_to_vmem [thread:$0]  %s70, 2048, %s72, [#allocation9], 128, 128, 8
    $region25: #{_ensemble_call.1} parent=1 // pred_fallthru
      _
    // Predicated region
    $region26: #{_ensemble_call.1} parent=1 // pred_check
      _
    $region27: #{_ensemble_call.1} parent=1 // pred_check_branch
      %79 = sbr.rel (0) target = $region29
    $region28: #{_ensemble_call.1} parent=1 // pred_region
      %81 = dma.done [#allocation3], 128
    $region29: #{_ensemble_call.1} parent=1 // pred_fallthru
      _
    // Predicated region
    $region30: #{_ensemble_call.1} parent=1 // pred_check
      _
    $region31: #{_ensemble_call.1} parent=1 // pred_check_branch
      %83 = sbr.rel (0) target = $region33
    $region32: #{_ensemble_call.1} parent=1 // pred_region
      %85 = dma.done [#allocation6], 128
    $region33: #{_ensemble_call.1} parent=1 // pred_fallthru
      _
    // Predicated region
    $region34: #{_ensemble_call.1} parent=1 // pred_check
      _
    $region35: #{_ensemble_call.1} parent=1 // pred_check_branch
      %87 = sbr.rel (0) target = $region37
    $region36: #{_ensemble_call.1} parent=1 // pred_region
      %89 = dma.done [#allocation6], 512
    $region37: #{_ensemble_call.1} parent=1 // pred_fallthru
      _
    // Predicated region
    $region38: #{_ensemble_call.1} parent=1 // pred_check
      _
    $region39: #{_ensemble_call.1} parent=1 // pred_check_branch
      %91 = sbr.rel (0) target = $region41
    $region40: #{_ensemble_call.1} parent=1 // pred_region
      %93 = dma.done [#allocation9], 256
    $region41: #{_ensemble_call.1} parent=1 // pred_fallthru
      _
    // Predicated region
    $region42: #{_ensemble_call.1} parent=1 // pred_check
      _
    $region43: #{_ensemble_call.1} parent=1 // pred_check_branch
      %95 = sbr.rel (0) target = $region45
    $region44: #{_ensemble_call.1} parent=1 // pred_region
      %97 = dma.done [#allocation9], 2048
    $region45: #{_ensemble_call.1} parent=1 // pred_fallthru
      _
    %v98 = vld [vmem:[#allocation2] sm:$0xff]
    %v99 = vld [vmem:[#allocation7] sm:$0xff]
    %v100 = vld [vmem:[#allocation7 + $0x8] sm:$0xff]
    %v101 = vld [vmem:[#allocation7 + $0x10] sm:$0xff]
    %v102 = vld [vmem:[#allocation7 + $0x18] sm:$0xff]
    %v103 = vld [vmem:[#allocation5] sm:$0xff]
    %v104 = vld [vmem:[#allocation8] sm:$0xff]
    %v105 = vld [vmem:[#allocation8 + $0x8] sm:$0xff]
    %vm106 = vcmask 130048
    %v108 = vsel %vm106, %v103, 0
    %110 = vmatpush.msra.mxu0 0.0
    %111 = vmatpush.msra.mxu0 0.0
    %112 = vmatpush.msra.mxu0 0.0
    %113 = vmatpush.msra.mxu0 0.0
    %114 = vmatpush.msra.mxu0 0.0
    %115 = vmatpush.msra.mxu0 0.0
    %116 = vmatpush.msra.mxu0 0.0
    %117 = vmatpush.msra.mxu0 0.0
    %118 = vmatpush.msra.mxu0 0.0
    %119 = vmatpush.msra.mxu0 0.0
    %120 = vmatpush.msra.mxu0 0.0
    %121 = vmatpush.msra.mxu0 0.0
    %122 = vmatpush.msra.mxu0 0.0
    %123 = vmatpush.msra.mxu0 0.0
    %124 = vmatpush.msra.mxu0 %v105
    %125 = vmatpush.msra.mxu0 %v104
    %126 = vmatmul.f32.gmra.mxu0 %v108
    %v127 = vpop.f32.mrf.mxu0
    %v128 = vadd.f32 0.0, %v127
    %129 = vdwg.mxu0
    %vm130 = vcmask 261120
    %v132 = vsel %vm130, %v98, 0
    %134 = vmatpush.msra.mxu0 0.0
    %135 = vmatpush.msra.mxu0 0.0
    %136 = vmatpush.msra.mxu0 0.0
    %137 = vmatpush.msra.mxu0 0.0
    %138 = vmatpush.msra.mxu0 0.0
    %139 = vmatpush.msra.mxu0 0.0
    %140 = vmatpush.msra.mxu0 0.0
    %141 = vmatpush.msra.mxu0 0.0
    %142 = vmatpush.msra.mxu0 0.0
    %143 = vmatpush.msra.mxu0 0.0
    %144 = vmatpush.msra.mxu0 0.0
    %145 = vmatpush.msra.mxu0 0.0
    %146 = vmatpush.msra.mxu0 %v102
    %147 = vmatpush.msra.mxu0 %v101
    %148 = vmatpush.msra.mxu0 %v100
    %149 = vmatpush.msra.mxu0 %v99
    %150 = vmatmul.f32.gmra.mxu0 %v132
    %v151 = vpop.f32.mrf.mxu0
    %v152 = vadd.f32 %v128, %v151
    %153 = vdwg.mxu0
    %v154 = vld [vmem:[%s4] sm:$0x1]
    %v156 = vperm.slane %v154, 0
    %v158 = vadd.f32 %v152, %v156
    %v159 = vmax.f32 %v158, 0.0
    %v160 = vld [vmem:[#allocation10] sm:$0xff]
    %v161 = vld [vmem:[#allocation10 + $0x8] sm:$0xff]
    %v162 = vld [vmem:[#allocation10 + $0x10] sm:$0xff]
    %v163 = vld [vmem:[#allocation10 + $0x18] sm:$0xff]
    %v164 = vld [vmem:[#allocation10 + $0x20] sm:$0xff]
    %v165 = vld [vmem:[#allocation10 + $0x28] sm:$0xff]
    %v166 = vld [vmem:[#allocation10 + $0x30] sm:$0xff]
    %v167 = vld [vmem:[#allocation10 + $0x38] sm:$0xff]
    %v168 = vld [vmem:[#allocation10 + $0x40] sm:$0xff]
    %v169 = vld [vmem:[#allocation10 + $0x48] sm:$0xff]
    %v170 = vld [vmem:[#allocation10 + $0x50] sm:$0xff]
    %v171 = vld [vmem:[#allocation10 + $0x58] sm:$0xff]
    %v172 = vld [vmem:[#allocation10 + $0x60] sm:$0xff]
    %v173 = vld [vmem:[#allocation10 + $0x68] sm:$0xff]
    %v174 = vld [vmem:[#allocation10 + $0x70] sm:$0xff]
    %v175 = vld [vmem:[#allocation10 + $0x78] sm:$0xff]
    %176 = vmatpush.msra.mxu0 %v175
    %177 = vmatpush.msra.mxu0 %v174
    %178 = vmatpush.msra.mxu0 %v173
    %179 = vmatpush.msra.mxu0 %v172
    %180 = vmatpush.msra.mxu0 %v171
    %181 = vmatpush.msra.mxu0 %v170
    %182 = vmatpush.msra.mxu0 %v169
    %183 = vmatpush.msra.mxu0 %v168
    %184 = vmatpush.msra.mxu0 %v167
    %185 = vmatpush.msra.mxu0 %v166
    %186 = vmatpush.msra.mxu0 %v165
    %187 = vmatpush.msra.mxu0 %v164
    %188 = vmatpush.msra.mxu0 %v163
    %189 = vmatpush.msra.mxu0 %v162
    %190 = vmatpush.msra.mxu0 %v161
    %191 = vmatpush.msra.mxu0 %v160
    %192 = vmatmul.f32.gmra.mxu0 %v159
    %v193 = vpop.f32.mrf.mxu0
    %v194 = vadd.f32 0.0, %v193
    %195 = vdwg.mxu0
    %196 = vst [vmem:[#allocation11] sm:$0xff] %v194
    // Predicated region
    $region46: #{_ensemble_call.1} parent=1 // pred_check
      _
    $region47: #{_ensemble_call.1} parent=1 // pred_check_branch
      %198 = sbr.rel (0) target = $region49
    $region48: #{_ensemble_call.1} parent=1 // pred_region
      %200 = vsyncadd [#allocation4], 0
      %s202 = sshll.u32 [#allocation11], 4
      %s203 = int_to_ptr.vmem [resolvable:$true] %s202
      %s204 = sshll.u32 %s6, 4
      %s205 = int_to_ptr.hbm [resolvable:$true] %s204
      %207 = dma.vmem_to_hbm [thread:$0]  %s203, 128, %s205, [#allocation4]
    $region49: #{_ensemble_call.1} parent=1 // pred_fallthru
      _
    // Predicated region
    $region50: #{_ensemble_call.1} parent=1 // pred_check
      _
    $region51: #{_ensemble_call.1} parent=1 // pred_check_branch
      %209 = sbr.rel (0) target = $region53
    $region52: #{_ensemble_call.1} parent=1 // pred_region
      %211 = dma.done [#allocation4], 128
    $region53: #{_ensemble_call.1} parent=1 // pred_fallthru
      _
    %212 = vsyncpa [#allocation3], 1
    %213 = vsyncpa [#allocation6], 1
    %214 = vsyncpa [#allocation9], 1
    %215 = vsyncpa [#allocation4], 1

</llo_original>
